<compile_context>
chip_gen: v7x
topology: tpu7x:2x2x1
jax: 0.10.0
libtpu: 0.0.40
codegen_flags: <defaults>
</compile_context>

<pallas_src>
import functools

import jax
import jax.numpy as jnp
from jax.experimental import pallas as pl
from jax.experimental.pallas import tpu as pltpu


def _round_up(x, m):
    return ((x + m - 1) // m) * m


def _mlp_kernel(lgb_ref, cnn_ref, fus_ref,
                w1a_ref, w1b_ref, w1c_ref, b1_ref,
                w2_ref, b2_ref, w3_ref, b3_ref, out_ref):
    # Layer 1: split-K matmul == concat([lgb, cnn, fused], 1) @ w1, f32 accumulate.
    h1 = jnp.dot(lgb_ref[...], w1a_ref[...], preferred_element_type=jnp.float32)
    h1 = h1 + jnp.dot(cnn_ref[...], w1b_ref[...], preferred_element_type=jnp.float32)
    h1 = h1 + jnp.dot(fus_ref[...], w1c_ref[...], preferred_element_type=jnp.float32)
    h1 = jnp.maximum(h1 + b1_ref[...], 0.0)            # ReLU; Dropout = identity (eval)

    # Layer 2: (tb, 128) @ (128, 64)
    h2 = jnp.dot(h1, w2_ref[...], preferred_element_type=jnp.float32)
    h2 = jnp.maximum(h2 + b2_ref[...], 0.0)            # ReLU; Dropout = identity (eval)

    # Layer 3: (tb, 64) @ (64, C) -> narrow store; output HBM stream is tiny.
    y = jnp.dot(h2, w3_ref[...], preferred_element_type=jnp.float32)
    out_ref[...] = (y + b3_ref[...]).astype(out_ref.dtype)


@functools.partial(jax.jit, static_argnames=("block_b",))
def hierarchical_gating_classifier(lgb, cnn, fused, params, *, block_b=2048):
    """params: dict with w1 (D,128), b1 (128,), w2 (128,64), b2 (64,), w3 (64,C), b3 (C,)."""
    B = lgb.shape[0]
    d_lgb, d_cnn, d_fus = lgb.shape[1], cnn.shape[1], fused.shape[1]
    D = d_lgb + d_cnn + d_fus
    C = params["w3"].shape[1]

    # ---- adaptive batch tiling ------------------------------------------------
    # Big tiles amortize the ~0.35us per-grid-step overhead; adaptive tb keeps
    # padding waste < ~8 rows/step; even step count lets v7x megacore split the
    # batch across both TensorCores (harmless on single-TC v5e/v6e).
    B8 = _round_up(max(B, 1), 8)
    n_steps = max(1, pl.cdiv(B8, block_b))
    if B8 > 8 and n_steps % 2 == 1:
        n_steps += 1
    tb = _round_up(pl.cdiv(B8, n_steps), 8)
    B_pad = n_steps * tb

    def prep(a):
        a = a.astype(jnp.float32)
        if B_pad != B:
            a = jnp.pad(a, ((0, B_pad - B), (0, 0)))
        return a

    lgb_p, cnn_p, fus_p = prep(lgb), prep(cnn), prep(fused)

    # Weights/biases: f32 (kernel is nowhere near MXU-bound), grid-invariant so
    # they stay VMEM-resident across grid steps. w1 is split row-wise once so the
    # kernel never needs a concatenated activation.
    w1 = params["w1"].astype(jnp.float32)
    w1a = w1[:d_lgb]
    w1b = w1[d_lgb:d_lgb + d_cnn]
    w1c = w1[d_lgb + d_cnn:]
    w2 = params["w2"].astype(jnp.float32)
    w3 = params["w3"].astype(jnp.float32)
    b1 = params["b1"].reshape(1, -1).astype(jnp.float32)
    b2 = params["b2"].reshape(1, -1).astype(jnp.float32)
    b3 = params["b3"].reshape(1, -1).astype(jnp.float32)

    grid = (B_pad // tb,)

    def resident(a):
        # Same block index every grid step -> loaded once, stays in VMEM.
        return pl.BlockSpec(a.shape, lambda i: (0, 0))

    in_specs = [
        pl.BlockSpec((tb, d_lgb), lambda i: (i, 0)),    # lgb: batch-tiled
        pl.BlockSpec((tb, d_cnn), lambda i: (i, 0)),    # cnn: batch-tiled
        pl.BlockSpec((tb, d_fus), lambda i: (i, 0)),    # fused: batch-tiled
        resident(w1a), resident(w1b), resident(w1c), resident(b1),
        resident(w2), resident(b2), resident(w3), resident(b3),
    ]
    out_spec = pl.BlockSpec((tb, C), lambda i: (i, 0))

    flops = 2 * B_pad * (D * 128 + 128 * 64 + 64 * C)
    bytes_accessed = 4 * (B_pad * D + B_pad * C
                          + D * 128 + 128 + 128 * 64 + 64 + 64 * C + C)

    out = pl.pallas_call(
        _mlp_kernel,
        out_shape=jax.ShapeDtypeStruct((B_pad, C), jnp.float32),
        grid=grid,
        in_specs=in_specs,
        out_specs=out_spec,
        compiler_params=pltpu.CompilerParams(
            dimension_semantics=("parallel",),          # megacore sharding on v7x
        ),
        cost_estimate=pl.CostEstimate(
            flops=flops, bytes_accessed=bytes_accessed, transcendentals=0),
    )(lgb_p, cnn_p, fus_p, w1a, w1b, w1c, b1, w2, b2, w3, b3)

    if B_pad != B:
        out = out[:B]      # rows only; class dim is never padded
    return out


def _init_params(key, lgb_dim, cnn_dim, fusion_dim, num_classes):
    d_in = lgb_dim + cnn_dim + fusion_dim
    ks = jax.random.split(key, 6)

    def lin(kw, kb, fan_in, fan_out):
        bound = 1.0 / jnp.sqrt(fan_in)
        w = jax.random.uniform(kw, (fan_in, fan_out), jnp.float32, -bound, bound)
        b = jax.random.uniform(kb, (fan_out,), jnp.float32, -bound, bound)
        return w, b

    w1, b1 = lin(ks[0], ks[1], d_in, 128)
    w2, b2 = lin(ks[2], ks[3], 128, 64)
    w3, b3 = lin(ks[4], ks[5], 64, num_classes)
    return {"w1": w1, "b1": b1, "w2": w2, "b2": b2, "w3": w3, "b3": b3}


if __name__ == "__main__":
    # TODO(synk): training-mode Dropout (random masking) is not implemented;
    # this kernel matches the module's eval-mode forward.
    lgb_dim, cnn_dim, fusion_dim, num_classes = 16, 32, 16, 8
    batch = 8

    key = jax.random.PRNGKey(0)
    k_lgb, k_cnn, k_fused, k_params = jax.random.split(key, 4)

    lgb = jax.random.normal(k_lgb, (batch, lgb_dim), jnp.float32)
    cnn = jax.random.normal(k_cnn, (batch, cnn_dim), jnp.float32)
    fused = jax.random.normal(k_fused, (batch, fusion_dim), jnp.float32)

    params = _init_params(k_params, lgb_dim, cnn_dim, fusion_dim, num_classes)

    out = hierarchical_gating_classifier(lgb, cnn, fused, params)
    out = jax.block_until_ready(out)
    assert out.shape == (batch, num_classes), out.shape

    # f32 reference of the same math.
    x = jnp.concatenate([lgb, cnn, fused], axis=1)
    h = jnp.maximum(x @ params["w1"] + params["b1"], 0.0)
    h = jnp.maximum(h @ params["w2"] + params["b2"], 0.0)
    ref = h @ params["w3"] + params["b3"]
    err = float(jnp.max(jnp.abs(out - ref)))
    assert jnp.allclose(out, ref, atol=3e-2, rtol=3e-2), err

    print("KERNEL_OK")
</pallas_src>

<mosaic_0001>
module attributes {stable_mosaic.version = 11 : i64} {
  func.func @_mlp_kernel(%arg0: i32, %arg1: memref<8x16xf32, #tpu.memory_space<vmem>>, %arg2: memref<8x32xf32, #tpu.memory_space<vmem>>, %arg3: memref<8x16xf32, #tpu.memory_space<vmem>>, %arg4: memref<16x128xf32, #tpu.memory_space<vmem>>, %arg5: memref<32x128xf32, #tpu.memory_space<vmem>>, %arg6: memref<16x128xf32, #tpu.memory_space<vmem>>, %arg7: memref<1x128xf32, #tpu.memory_space<vmem>>, %arg8: memref<128x64xf32, #tpu.memory_space<vmem>>, %arg9: memref<1x64xf32, #tpu.memory_space<vmem>>, %arg10: memref<64x8xf32, #tpu.memory_space<vmem>>, %arg11: memref<1x8xf32, #tpu.memory_space<vmem>>, %arg12: memref<8x8xf32, #tpu.memory_space<vmem>>) attributes {dimension_semantics = [#tpu.dimension_semantics<parallel>], iteration_bounds = array<i64: 1>, scalar_prefetch = 0 : i64, scratch_operands = 0 : i64, tpu.core_type = #tpu.core_type<tc>, window_params = [{transform_indices = @transform_0, window_bounds = array<i64: 8, 16>}, {transform_indices = @transform_1, window_bounds = array<i64: 8, 32>}, {transform_indices = @transform_2, window_bounds = array<i64: 8, 16>}, {pipeline_mode = #tpu.pipeline_mode<synchronous>, transform_indices = @transform_3, window_bounds = array<i64: 16, 128>}, {pipeline_mode = #tpu.pipeline_mode<synchronous>, transform_indices = @transform_4, window_bounds = array<i64: 32, 128>}, {pipeline_mode = #tpu.pipeline_mode<synchronous>, transform_indices = @transform_5, window_bounds = array<i64: 16, 128>}, {pipeline_mode = #tpu.pipeline_mode<synchronous>, transform_indices = @transform_6, window_bounds = array<i64: 1, 128>}, {pipeline_mode = #tpu.pipeline_mode<synchronous>, transform_indices = @transform_7, window_bounds = array<i64: 128, 64>}, {pipeline_mode = #tpu.pipeline_mode<synchronous>, transform_indices = @transform_8, window_bounds = array<i64: 1, 64>}, {pipeline_mode = #tpu.pipeline_mode<synchronous>, transform_indices = @transform_9, window_bounds = array<i64: 64, 8>}, {pipeline_mode = #tpu.pipeline_mode<synchronous>, transform_indices = @transform_10, window_bounds = array<i64: 1, 8>}, {transform_indices = @transform_11, window_bounds = array<i64: 8, 8>}]} {
    %c0 = arith.constant 0 : index
    %c0_0 = arith.constant 0 : index
    %0 = vector.load %arg1[%c0, %c0_0] : memref<8x16xf32, #tpu.memory_space<vmem>>, vector<8x16xf32>
    %c0_1 = arith.constant 0 : index
    %c0_2 = arith.constant 0 : index
    %1 = vector.load %arg4[%c0_1, %c0_2] : memref<16x128xf32, #tpu.memory_space<vmem>>, vector<16x128xf32>
    %cst = arith.constant dense<0.000000e+00> : vector<8x128xf32>
    %2 = tpu.matmul %0, %1, %cst {dimension_numbers = #tpu.dot_dimension_numbers<[1], [0], [0], [1], [0, 0, 1, 1], [], []>} : vector<8x16xf32>, vector<16x128xf32>, vector<8x128xf32> -> vector<8x128xf32>
    %c0_3 = arith.constant 0 : index
    %c0_4 = arith.constant 0 : index
    %3 = vector.load %arg2[%c0_3, %c0_4] : memref<8x32xf32, #tpu.memory_space<vmem>>, vector<8x32xf32>
    %c0_5 = arith.constant 0 : index
    %c0_6 = arith.constant 0 : index
    %4 = vector.load %arg5[%c0_5, %c0_6] : memref<32x128xf32, #tpu.memory_space<vmem>>, vector<32x128xf32>
    %cst_7 = arith.constant dense<0.000000e+00> : vector<8x128xf32>
    %5 = tpu.matmul %3, %4, %cst_7 {dimension_numbers = #tpu.dot_dimension_numbers<[1], [0], [0], [1], [0, 0, 1, 1], [], []>} : vector<8x32xf32>, vector<32x128xf32>, vector<8x128xf32> -> vector<8x128xf32>
    %6 = arith.addf %2, %5 : vector<8x128xf32>
    %c0_8 = arith.constant 0 : index
    %c0_9 = arith.constant 0 : index
    %7 = vector.load %arg3[%c0_8, %c0_9] : memref<8x16xf32, #tpu.memory_space<vmem>>, vector<8x16xf32>
    %c0_10 = arith.constant 0 : index
    %c0_11 = arith.constant 0 : index
    %8 = vector.load %arg6[%c0_10, %c0_11] : memref<16x128xf32, #tpu.memory_space<vmem>>, vector<16x128xf32>
    %cst_12 = arith.constant dense<0.000000e+00> : vector<8x128xf32>
    %9 = tpu.matmul %7, %8, %cst_12 {dimension_numbers = #tpu.dot_dimension_numbers<[1], [0], [0], [1], [0, 0, 1, 1], [], []>} : vector<8x16xf32>, vector<16x128xf32>, vector<8x128xf32> -> vector<8x128xf32>
    %10 = arith.addf %6, %9 : vector<8x128xf32>
    %c0_13 = arith.constant 0 : index
    %c0_14 = arith.constant 0 : index
    %11 = vector.load %arg7[%c0_13, %c0_14] : memref<1x128xf32, #tpu.memory_space<vmem>>, vector<1x128xf32>
    %12 = vector.broadcast %11 : vector<1x128xf32> to vector<8x128xf32>
    %13 = arith.addf %10, %12 : vector<8x128xf32>
    %cst_15 = arith.constant 0.000000e+00 : f32
    %14 = vector.broadcast %cst_15 : f32 to vector<8x128xf32>
    %15 = arith.maximumf %13, %14 : vector<8x128xf32>
    %c0_16 = arith.constant 0 : index
    %c0_17 = arith.constant 0 : index
    %16 = vector.load %arg8[%c0_16, %c0_17] : memref<128x64xf32, #tpu.memory_space<vmem>>, vector<128x64xf32>
    %cst_18 = arith.constant dense<0.000000e+00> : vector<8x64xf32>
    %17 = tpu.matmul %15, %16, %cst_18 {dimension_numbers = #tpu.dot_dimension_numbers<[1], [0], [0], [1], [0, 0, 1, 1], [], []>} : vector<8x128xf32>, vector<128x64xf32>, vector<8x64xf32> -> vector<8x64xf32>
    %c0_19 = arith.constant 0 : index
    %c0_20 = arith.constant 0 : index
    %18 = vector.load %arg9[%c0_19, %c0_20] : memref<1x64xf32, #tpu.memory_space<vmem>>, vector<1x64xf32>
    %19 = vector.broadcast %18 : vector<1x64xf32> to vector<8x64xf32>
    %20 = arith.addf %17, %19 : vector<8x64xf32>
    %cst_21 = arith.constant 0.000000e+00 : f32
    %21 = vector.broadcast %cst_21 : f32 to vector<8x64xf32>
    %22 = arith.maximumf %20, %21 : vector<8x64xf32>
    %c0_22 = arith.constant 0 : index
    %c0_23 = arith.constant 0 : index
    %23 = vector.load %arg10[%c0_22, %c0_23] : memref<64x8xf32, #tpu.memory_space<vmem>>, vector<64x8xf32>
    %cst_24 = arith.constant dense<0.000000e+00> : vector<8x8xf32>
    %24 = tpu.matmul %22, %23, %cst_24 {dimension_numbers = #tpu.dot_dimension_numbers<[1], [0], [0], [1], [0, 0, 1, 1], [], []>} : vector<8x64xf32>, vector<64x8xf32>, vector<8x8xf32> -> vector<8x8xf32>
    %c0_25 = arith.constant 0 : index
    %c0_26 = arith.constant 0 : index
    %25 = vector.load %arg11[%c0_25, %c0_26] : memref<1x8xf32, #tpu.memory_space<vmem>>, vector<1x8xf32>
    %26 = vector.broadcast %25 : vector<1x8xf32> to vector<8x8xf32>
    %27 = arith.addf %24, %26 : vector<8x8xf32>
    %c0_27 = arith.constant 0 : index
    %c0_28 = arith.constant 0 : index
    %28 = vector.load %arg12[%c0_27, %c0_28] : memref<8x8xf32, #tpu.memory_space<vmem>>, vector<8x8xf32>
    tpu.vector_store %arg12[%c0_27, %c0_28], %27 {strides = array<i32>} : memref<8x8xf32, #tpu.memory_space<vmem>>, vector<8x8xf32>,
    return
  }
  func.func @transform_0(%arg0: i32) -> (i32, i32) {
    %c0_i32 = arith.constant 0 : i32
    %c0_i32_0 = arith.constant 0 : i32
    return %arg0, %c0_i32 : i32, i32
  }
  func.func @transform_1(%arg0: i32) -> (i32, i32) {
    %c0_i32 = arith.constant 0 : i32
    %c0_i32_0 = arith.constant 0 : i32
    return %arg0, %c0_i32 : i32, i32
  }
  func.func @transform_2(%arg0: i32) -> (i32, i32) {
    %c0_i32 = arith.constant 0 : i32
    %c0_i32_0 = arith.constant 0 : i32
    return %arg0, %c0_i32 : i32, i32
  }
  func.func @transform_3(%arg0: i32) -> (i32, i32) {
    %c0_i32 = arith.constant 0 : i32
    %c0_i32_0 = arith.constant 0 : i32
    %c0_i32_1 = arith.constant 0 : i32
    return %c0_i32, %c0_i32_0 : i32, i32
  }
  func.func @transform_4(%arg0: i32) -> (i32, i32) {
    %c0_i32 = arith.constant 0 : i32
    %c0_i32_0 = arith.constant 0 : i32
    %c0_i32_1 = arith.constant 0 : i32
    return %c0_i32, %c0_i32_0 : i32, i32
  }
  func.func @transform_5(%arg0: i32) -> (i32, i32) {
    %c0_i32 = arith.constant 0 : i32
    %c0_i32_0 = arith.constant 0 : i32
    %c0_i32_1 = arith.constant 0 : i32
    return %c0_i32, %c0_i32_0 : i32, i32
  }
  func.func @transform_6(%arg0: i32) -> (i32, i32) {
    %c0_i32 = arith.constant 0 : i32
    %c0_i32_0 = arith.constant 0 : i32
    %c0_i32_1 = arith.constant 0 : i32
    return %c0_i32, %c0_i32_0 : i32, i32
  }
  func.func @transform_7(%arg0: i32) -> (i32, i32) {
    %c0_i32 = arith.constant 0 : i32
    %c0_i32_0 = arith.constant 0 : i32
    %c0_i32_1 = arith.constant 0 : i32
    return %c0_i32, %c0_i32_0 : i32, i32
  }
  func.func @transform_8(%arg0: i32) -> (i32, i32) {
    %c0_i32 = arith.constant 0 : i32
    %c0_i32_0 = arith.constant 0 : i32
    %c0_i32_1 = arith.constant 0 : i32
    return %c0_i32, %c0_i32_0 : i32, i32
  }
  func.func @transform_9(%arg0: i32) -> (i32, i32) {
    %c0_i32 = arith.constant 0 : i32
    %c0_i32_0 = arith.constant 0 : i32
    %c0_i32_1 = arith.constant 0 : i32
    return %c0_i32, %c0_i32_0 : i32, i32
  }
  func.func @transform_10(%arg0: i32) -> (i32, i32) {
    %c0_i32 = arith.constant 0 : i32
    %c0_i32_0 = arith.constant 0 : i32
    %c0_i32_1 = arith.constant 0 : i32
    return %c0_i32, %c0_i32_0 : i32, i32
  }
  func.func @transform_11(%arg0: i32) -> (i32, i32) {
    %c0_i32 = arith.constant 0 : i32
    %c0_i32_0 = arith.constant 0 : i32
    return %arg0, %c0_i32 : i32, i32
  }
}

</mosaic_0001>

<llo_original>
// kernel: hierarchical_gating_classifier.1
$region0: #{hierarchical_gating_classifier.1}
  #allocation0 [shape = 'u32[]', space=smem, size = 0x4, offset = 0x4, fixed_abs, tag = 'smem constant byte address 0x4 - core index']
  #allocation1 [shape = 'u32[144,128]{1,0:T(1,128)}', space=vmem, size = 0x12000, scoped, tag = 'internal scratch']
  %s0 = inlined_call_operand.vmem [shape: f32[8,16], index: 0, kind: input, shape index: {}]
  %s1 = inlined_call_operand.vmem [shape: f32[8,32], index: 1, kind: input, shape index: {}]
  %s2 = inlined_call_operand.vmem [shape: f32[8,16], index: 2, kind: input, shape index: {}]
  %s3 = inlined_call_operand.vmem [shape: f32[16,128], index: 3, kind: input, shape index: {}]
  %s4 = inlined_call_operand.vmem [shape: f32[32,128], index: 4, kind: input, shape index: {}]
  %s5 = inlined_call_operand.vmem [shape: f32[16,128], index: 5, kind: input, shape index: {}]
  %s6 = inlined_call_operand.vmem [shape: f32[1,128], index: 6, kind: input, shape index: {}]
  %s7 = inlined_call_operand.vmem [shape: f32[128,64], index: 7, kind: input, shape index: {}]
  %s8 = inlined_call_operand.vmem [shape: f32[1,64], index: 8, kind: input, shape index: {}]
  %s9 = inlined_call_operand.vmem [shape: f32[64,8], index: 9, kind: input, shape index: {}]
  %s10 = inlined_call_operand.vmem [shape: f32[1,8], index: 10, kind: input, shape index: {}]
  %s11 = inlined_call_operand.hbm [shape: f32[8,8], index: 11, kind: output, shape index: {}]
  %s12 = sld [smem:[#allocation0]]
  $region54: #{hierarchical_gating_classifier.1} parent=0
    _
  %s14 = ssub.s32 1, %s12
  %s15 = scalar_select 0, %s14, %s12
  $region1: #{hierarchical_gating_classifier.1} parent=0
    #allocation2 [shape = 'u8[4096]{0}', space=vmem, size = 0x1000, scoped, tag = 'output window, operand 0, single buffered']
    #allocation3 [shape = 's32[1]{0}', space=sflag, size = 0x4, scoped, tag = 'scoped memory for hierarchical_gating_classifier.1']
    %16 = vsyncpa [#allocation3], 0
    // Predicated region
    $region2: #{hierarchical_gating_classifier.1} parent=1 // pred_check
      _
    $region3: #{hierarchical_gating_classifier.1} parent=1 // pred_check_branch
      %18 = sbr.rel (0) target = $region5
    $region4: #{hierarchical_gating_classifier.1} parent=1 // pred_region
      _
    $region5: #{hierarchical_gating_classifier.1} parent=1 // pred_fallthru
      _
    // Predicated region
    $region6: #{hierarchical_gating_classifier.1} parent=1 // pred_check
      _
    $region7: #{hierarchical_gating_classifier.1} parent=1 // pred_check_branch
      %20 = sbr.rel (0) target = $region9
    $region8: #{hierarchical_gating_classifier.1} parent=1 // pred_region
      _
    $region9: #{hierarchical_gating_classifier.1} parent=1 // pred_fallthru
      _
    // Predicated region
    $region10: #{hierarchical_gating_classifier.1} parent=1 // pred_check
      _
    $region11: #{hierarchical_gating_classifier.1} parent=1 // pred_check_branch
      %22 = sbr.rel (0) target = $region13
    $region12: #{hierarchical_gating_classifier.1} parent=1 // pred_region
      _
    $region13: #{hierarchical_gating_classifier.1} parent=1 // pred_fallthru
      _
    // Predicated region
    $region14: #{hierarchical_gating_classifier.1} parent=1 // pred_check
      _
    $region15: #{hierarchical_gating_classifier.1} parent=1 // pred_check_branch
      %24 = sbr.rel (0) target = $region17
    $region16: #{hierarchical_gating_classifier.1} parent=1 // pred_region
      _
    $region17: #{hierarchical_gating_classifier.1} parent=1 // pred_fallthru
      _
    // Predicated region
    $region18: #{hierarchical_gating_classifier.1} parent=1 // pred_check
      _
    $region19: #{hierarchical_gating_classifier.1} parent=1 // pred_check_branch
      %26 = sbr.rel (0) target = $region21
    $region20: #{hierarchical_gating_classifier.1} parent=1 // pred_region
      _
    $region21: #{hierarchical_gating_classifier.1} parent=1 // pred_fallthru
      _
    // Predicated region
    $region22: #{hierarchical_gating_classifier.1} parent=1 // pred_check
      _
    $region23: #{hierarchical_gating_classifier.1} parent=1 // pred_check_branch
      %28 = sbr.rel (0) target = $region25
    $region24: #{hierarchical_gating_classifier.1} parent=1 // pred_region
      _
    $region25: #{hierarchical_gating_classifier.1} parent=1 // pred_fallthru
      _
    // Predicated region
    $region26: #{hierarchical_gating_classifier.1} parent=1 // pred_check
      _
    $region27: #{hierarchical_gating_classifier.1} parent=1 // pred_check_branch
      %30 = sbr.rel (0) target = $region29
    $region28: #{hierarchical_gating_classifier.1} parent=1 // pred_region
      _
    $region29: #{hierarchical_gating_classifier.1} parent=1 // pred_fallthru
      _
    // Predicated region
    $region30: #{hierarchical_gating_classifier.1} parent=1 // pred_check
      _
    $region31: #{hierarchical_gating_classifier.1} parent=1 // pred_check_branch
      %32 = sbr.rel (0) target = $region33
    $region32: #{hierarchical_gating_classifier.1} parent=1 // pred_region
      _
    $region33: #{hierarchical_gating_classifier.1} parent=1 // pred_fallthru
      _
    // Predicated region
    $region34: #{hierarchical_gating_classifier.1} parent=1 // pred_check
      _
    $region35: #{hierarchical_gating_classifier.1} parent=1 // pred_check_branch
      %34 = sbr.rel (0) target = $region37
    $region36: #{hierarchical_gating_classifier.1} parent=1 // pred_region
      _
    $region37: #{hierarchical_gating_classifier.1} parent=1 // pred_fallthru
      _
    // Predicated region
    $region38: #{hierarchical_gating_classifier.1} parent=1 // pred_check
      _
    $region39: #{hierarchical_gating_classifier.1} parent=1 // pred_check_branch
      %36 = sbr.rel (0) target = $region41
    $region40: #{hierarchical_gating_classifier.1} parent=1 // pred_region
      _
    $region41: #{hierarchical_gating_classifier.1} parent=1 // pred_fallthru
      _
    // Predicated region
    $region42: #{hierarchical_gating_classifier.1} parent=1 // pred_check
      _
    $region43: #{hierarchical_gating_classifier.1} parent=1 // pred_check_branch
      %38 = sbr.rel (0) target = $region45
    $region44: #{hierarchical_gating_classifier.1} parent=1 // pred_region
      _
    $region45: #{hierarchical_gating_classifier.1} parent=1 // pred_fallthru
      _
    %v39 = vld [vmem:[%s0] sm:$0xff]
    %v40 = vld [vmem:[%s3] sm:$0xff]
    %v41 = vld [vmem:[%s3 + $0x8] sm:$0xff]
    %v42 = vld [vmem:[%s1] sm:$0xff]
    %v43 = vld [vmem:[%s4] sm:$0xff]
    %v44 = vld [vmem:[%s4 + $0x8] sm:$0xff]
    %v45 = vld [vmem:[%s4 + $0x10] sm:$0xff]
    %v46 = vld [vmem:[%s4 + $0x18] sm:$0xff]
    %vm47 = vcmask 261120
    %v49 = vsel %vm47, %v42, 0
    %51 = vmatprep.subr.mxu0 0.0
    %52 = vmatpush1.msra.mxu0 %v43
    %53 = vmatprep.subr.mxu0 0.0
    %54 = vmatpush1.msra.mxu0 %v44
    %55 = vmatprep.subr.mxu0 0.0
    %56 = vmatpush1.msra.mxu0 %v45
    %57 = vmatprep.subr.mxu0 0.0
    %58 = vmatpush1.msra.mxu0 %v46
    %59 = vmatprep.subr.mxu0 0.0
    %60 = vmatpush1.msra.mxu0 0.0
    %61 = vmatprep.subr.mxu0 0.0
    %62 = vmatpush1.msra.mxu0 0.0
    %63 = vmatprep.subr.mxu0 0.0
    %64 = vmatpush1.msra.mxu0 0.0
    %65 = vmatprep.subr.mxu0 0.0
    %66 = vmatpush1.msra.mxu0 0.0
    %67 = vmatprep.subr.mxu0 0.0
    %68 = vmatpush1.msra.mxu0 0.0
    %69 = vmatprep.subr.mxu0 0.0
    %70 = vmatpush1.msra.mxu0 0.0
    %71 = vmatprep.subr.mxu0 0.0
    %72 = vmatpush1.msra.mxu0 0.0
    %73 = vmatprep.subr.mxu0 0.0
    %74 = vmatpush1.msra.mxu0 0.0
    %75 = vmatprep.subr.mxu0 0.0
    %76 = vmatpush1.msra.mxu0 0.0
    %77 = vmatprep.subr.mxu0 0.0
    %78 = vmatpush1.msra.mxu0 0.0
    %79 = vmatprep.subr.mxu0 0.0
    %80 = vmatpush1.msra.mxu0 0.0
    %81 = vmatprep.subr.mxu0 0.0
    %82 = vmatpush1.msra.mxu0 0.0
    %83 = vmatprep.subr.mxu0 0.0
    %84 = vmatpush1.msra.mxu0 0.0
    %85 = vmatprep.subr.mxu0 0.0
    %86 = vmatpush1.msra.mxu0 0.0
    %87 = vmatprep.subr.mxu0 0.0
    %88 = vmatpush1.msra.mxu0 0.0
    %89 = vmatprep.subr.mxu0 0.0
    %90 = vmatpush1.msra.mxu0 0.0
    %91 = vmatprep.subr.mxu0 0.0
    %92 = vmatpush1.msra.mxu0 0.0
    %93 = vmatprep.subr.mxu0 0.0
    %94 = vmatpush1.msra.mxu0 0.0
    %95 = vmatprep.subr.mxu0 0.0
    %96 = vmatpush1.msra.mxu0 0.0
    %97 = vmatprep.subr.mxu0 0.0
    %98 = vmatpush1.msra.mxu0 0.0
    %99 = vmatprep.subr.mxu0 0.0
    %100 = vmatpush1.msra.mxu0 0.0
    %101 = vmatprep.subr.mxu0 0.0
    %102 = vmatpush1.msra.mxu0 0.0
    %103 = vmatprep.subr.mxu0 0.0
    %104 = vmatpush1.msra.mxu0 0.0
    %105 = vmatprep.subr.mxu0 0.0
    %106 = vmatpush1.msra.mxu0 0.0
    %107 = vmatprep.subr.mxu0 0.0
    %108 = vmatpush1.msra.mxu0 0.0
    %109 = vmatprep.subr.mxu0 0.0
    %110 = vmatpush1.msra.mxu0 0.0
    %111 = vmatprep.subr.mxu0 0.0
    %112 = vmatpush1.msra.mxu0 0.0
    %113 = vmatprep.subr.mxu0 0.0
    %114 = vmatpush1.msra.mxu0 0.0
    %115 = vmatprep.mubr.f32.mxu0 0.0
    %116 = vmatmul.mubr.f32.gmra.mrb[0].mxu0 %v49
    %v117 = vpop.f32.mrb[0].mxu0
    %v118 = vadd.f32 0.0, %v117
    %v119 = vpop.f32.mrb[0].mxu0
    %120 = vdwg.mxu0
    %vm121 = vcmask 130048
    %v123 = vsel %vm121, %v39, 0
    %125 = vmatprep.subr.mxu0 0.0
    %126 = vmatpush1.msra.mxu0 %v40
    %127 = vmatprep.subr.mxu0 0.0
    %128 = vmatpush1.msra.mxu0 %v41
    %129 = vmatprep.subr.mxu0 0.0
    %130 = vmatpush1.msra.mxu0 0.0
    %131 = vmatprep.subr.mxu0 0.0
    %132 = vmatpush1.msra.mxu0 0.0
    %133 = vmatprep.subr.mxu0 0.0
    %134 = vmatpush1.msra.mxu0 0.0
    %135 = vmatprep.subr.mxu0 0.0
    %136 = vmatpush1.msra.mxu0 0.0
    %137 = vmatprep.subr.mxu0 0.0
    %138 = vmatpush1.msra.mxu0 0.0
    %139 = vmatprep.subr.mxu0 0.0
    %140 = vmatpush1.msra.mxu0 0.0
    %141 = vmatprep.subr.mxu0 0.0
    %142 = vmatpush1.msra.mxu0 0.0
    %143 = vmatprep.subr.mxu0 0.0
    %144 = vmatpush1.msra.mxu0 0.0
    %145 = vmatprep.subr.mxu0 0.0
    %146 = vmatpush1.msra.mxu0 0.0
    %147 = vmatprep.subr.mxu0 0.0
    %148 = vmatpush1.msra.mxu0 0.0
    %149 = vmatprep.subr.mxu0 0.0
    %150 = vmatpush1.msra.mxu0 0.0
    %151 = vmatprep.subr.mxu0 0.0
    %152 = vmatpush1.msra.mxu0 0.0
    %153 = vmatprep.subr.mxu0 0.0
    %154 = vmatpush1.msra.mxu0 0.0
    %155 = vmatprep.subr.mxu0 0.0
    %156 = vmatpush1.msra.mxu0 0.0
    %157 = vmatprep.subr.mxu0 0.0
    %158 = vmatpush1.msra.mxu0 0.0
    %159 = vmatprep.subr.mxu0 0.0
    %160 = vmatpush1.msra.mxu0 0.0
    %161 = vmatprep.subr.mxu0 0.0
    %162 = vmatpush1.msra.mxu0 0.0
    %163 = vmatprep.subr.mxu0 0.0
    %164 = vmatpush1.msra.mxu0 0.0
    %165 = vmatprep.subr.mxu0 0.0
    %166 = vmatpush1.msra.mxu0 0.0
    %167 = vmatprep.subr.mxu0 0.0
    %168 = vmatpush1.msra.mxu0 0.0
    %169 = vmatprep.subr.mxu0 0.0
    %170 = vmatpush1.msra.mxu0 0.0
    %171 = vmatprep.subr.mxu0 0.0
    %172 = vmatpush1.msra.mxu0 0.0
    %173 = vmatprep.subr.mxu0 0.0
    %174 = vmatpush1.msra.mxu0 0.0
    %175 = vmatprep.subr.mxu0 0.0
    %176 = vmatpush1.msra.mxu0 0.0
    %177 = vmatprep.subr.mxu0 0.0
    %178 = vmatpush1.msra.mxu0 0.0
    %179 = vmatprep.subr.mxu0 0.0
    %180 = vmatpush1.msra.mxu0 0.0
    %181 = vmatprep.subr.mxu0 0.0
    %182 = vmatpush1.msra.mxu0 0.0
    %183 = vmatprep.subr.mxu0 0.0
    %184 = vmatpush1.msra.mxu0 0.0
    %185 = vmatprep.subr.mxu0 0.0
    %186 = vmatpush1.msra.mxu0 0.0
    %187 = vmatprep.subr.mxu0 0.0
    %188 = vmatpush1.msra.mxu0 0.0
    %189 = vmatprep.mubr.f32.mxu0 0.0
    %190 = vmatmul.mubr.f32.gmra.mrb[0].mxu0 %v123
    %v191 = vpop.f32.mrb[0].mxu0
    %v192 = vadd.f32 %v118, %v191
    %v193 = vpop.f32.mrb[0].mxu0
    %194 = vdwg.mxu0
    %v195 = vld [vmem:[%s2] sm:$0xff]
    %v196 = vld [vmem:[%s5] sm:$0xff]
    %v197 = vld [vmem:[%s5 + $0x8] sm:$0xff]
    %v199 = vsel %vm121, %v195, 0
    %201 = vmatprep.subr.mxu0 0.0
    %202 = vmatpush1.msra.mxu0 %v196
    %203 = vmatprep.subr.mxu0 0.0
    %204 = vmatpush1.msra.mxu0 %v197
    %205 = vmatprep.subr.mxu0 0.0
    %206 = vmatpush1.msra.mxu0 0.0
    %207 = vmatprep.subr.mxu0 0.0
    %208 = vmatpush1.msra.mxu0 0.0
    %209 = vmatprep.subr.mxu0 0.0
    %210 = vmatpush1.msra.mxu0 0.0
    %211 = vmatprep.subr.mxu0 0.0
    %212 = vmatpush1.msra.mxu0 0.0
    %213 = vmatprep.subr.mxu0 0.0
    %214 = vmatpush1.msra.mxu0 0.0
    %215 = vmatprep.subr.mxu0 0.0
    %216 = vmatpush1.msra.mxu0 0.0
    %217 = vmatprep.subr.mxu0 0.0
    %218 = vmatpush1.msra.mxu0 0.0
    %219 = vmatprep.subr.mxu0 0.0
    %220 = vmatpush1.msra.mxu0 0.0
    %221 = vmatprep.subr.mxu0 0.0
    %222 = vmatpush1.msra.mxu0 0.0
    %223 = vmatprep.subr.mxu0 0.0
    %224 = vmatpush1.msra.mxu0 0.0
    %225 = vmatprep.subr.mxu0 0.0
    %226 = vmatpush1.msra.mxu0 0.0
    %227 = vmatprep.subr.mxu0 0.0
    %228 = vmatpush1.msra.mxu0 0.0
    %229 = vmatprep.subr.mxu0 0.0
    %230 = vmatpush1.msra.mxu0 0.0
    %231 = vmatprep.subr.mxu0 0.0
    %232 = vmatpush1.msra.mxu0 0.0
    %233 = vmatprep.subr.mxu0 0.0
    %234 = vmatpush1.msra.mxu0 0.0
    %235 = vmatprep.subr.mxu0 0.0
    %236 = vmatpush1.msra.mxu0 0.0
    %237 = vmatprep.subr.mxu0 0.0
    %238 = vmatpush1.msra.mxu0 0.0
    %239 = vmatprep.subr.mxu0 0.0
    %240 = vmatpush1.msra.mxu0 0.0
    %241 = vmatprep.subr.mxu0 0.0
    %242 = vmatpush1.msra.mxu0 0.0
    %243 = vmatprep.subr.mxu0 0.0
    %244 = vmatpush1.msra.mxu0 0.0
    %245 = vmatprep.subr.mxu0 0.0
    %246 = vmatpush1.msra.mxu0 0.0
    %247 = vmatprep.subr.mxu0 0.0
    %248 = vmatpush1.msra.mxu0 0.0
    %249 = vmatprep.subr.mxu0 0.0
    %250 = vmatpush1.msra.mxu0 0.0
    %251 = vmatprep.subr.mxu0 0.0
    %252 = vmatpush1.msra.mxu0 0.0
    %253 = vmatprep.subr.mxu0 0.0
    %254 = vmatpush1.msra.mxu0 0.0
    %255 = vmatprep.subr.mxu0 0.0
    %256 = vmatpush1.msra.mxu0 0.0
    %257 = vmatprep.subr.mxu0 0.0
    %258 = vmatpush1.msra.mxu0 0.0
    %259 = vmatprep.subr.mxu0 0.0
    %260 = vmatpush1.msra.mxu0 0.0
    %261 = vmatprep.subr.mxu0 0.0
    %262 = vmatpush1.msra.mxu0 0.0
    %263 = vmatprep.subr.mxu0 0.0
    %264 = vmatpush1.msra.mxu0 0.0
    %265 = vmatprep.mubr.f32.mxu0 0.0
    %266 = vmatmul.mubr.f32.gmra.mrb[0].mxu0 %v199
    %v267 = vpop.f32.mrb[0].mxu0
    %v268 = vadd.f32 0.0, %v267
    %v269 = vpop.f32.mrb[0].mxu0
    %270 = vdwg.mxu0
    %v271 = vadd.f32 %v192, %v268
    %v272 = vld [vmem:[%s6] sm:$0x1]
    %v274 = vlaneseq
    %v275 = vshrl.u32 %v274, 7
    %v276 = vsub.s32 0, %v275
    %v277 = vrot.slane %v272, %v276
    %v279 = vadd.f32 %v271, %v277
    %v280 = vmax.f32 %v279, 0.0
    %v281 = vld [vmem:[%s7] sm:$0xff]
    %v282 = vld [vmem:[%s7 + $0x8] sm:$0xff]
    %v283 = vld [vmem:[%s7 + $0x10] sm:$0xff]
    %v284 = vld [vmem:[%s7 + $0x18] sm:$0xff]
    %v285 = vld [vmem:[%s7 + $0x20] sm:$0xff]
    %v286 = vld [vmem:[%s7 + $0x28] sm:$0xff]
    %v287 = vld [vmem:[%s7 + $0x30] sm:$0xff]
    %v288 = vld [vmem:[%s7 + $0x38] sm:$0xff]
    %v289 = vld [vmem:[%s7 + $0x40] sm:$0xff]
    %v290 = vld [vmem:[%s7 + $0x48] sm:$0xff]
    %v291 = vld [vmem:[%s7 + $0x50] sm:$0xff]
    %v292 = vld [vmem:[%s7 + $0x58] sm:$0xff]
    %v293 = vld [vmem:[%s7 + $0x60] sm:$0xff]
    %v294 = vld [vmem:[%s7 + $0x68] sm:$0xff]
    %v295 = vld [vmem:[%s7 + $0x70] sm:$0xff]
    %v296 = vld [vmem:[%s7 + $0x78] sm:$0xff]
    %v297 = vld [vmem:[%s8] sm:$0x1]
    %v299 = vlaneseq
    %v300 = vshrl.u32 %v299, 7
    %v301 = vsub.s32 0, %v300
    %v302 = vrot.slane %v297, %v301
    %304 = vmatprep.subr.mxu0 0.0
    %305 = vmatpush1.msra.mxu0 %v281
    %306 = vmatprep.subr.mxu0 0.0
    %307 = vmatpush1.msra.mxu0 %v282
    %308 = vmatprep.subr.mxu0 0.0
    %309 = vmatpush1.msra.mxu0 %v283
    %310 = vmatprep.subr.mxu0 0.0
    %311 = vmatpush1.msra.mxu0 %v284
    %312 = vmatprep.subr.mxu0 0.0
    %313 = vmatpush1.msra.mxu0 %v285
    %314 = vmatprep.subr.mxu0 0.0
    %315 = vmatpush1.msra.mxu0 %v286
    %316 = vmatprep.subr.mxu0 0.0
    %317 = vmatpush1.msra.mxu0 %v287
    %318 = vmatprep.subr.mxu0 0.0
    %319 = vmatpush1.msra.mxu0 %v288
    %320 = vmatprep.subr.mxu0 0.0
    %321 = vmatpush1.msra.mxu0 %v289
    %322 = vmatprep.subr.mxu0 0.0
    %323 = vmatpush1.msra.mxu0 %v290
    %324 = vmatprep.subr.mxu0 0.0
    %325 = vmatpush1.msra.mxu0 %v291
    %326 = vmatprep.subr.mxu0 0.0
    %327 = vmatpush1.msra.mxu0 %v292
    %328 = vmatprep.subr.mxu0 0.0
    %329 = vmatpush1.msra.mxu0 %v293
    %330 = vmatprep.subr.mxu0 0.0
    %331 = vmatpush1.msra.mxu0 %v294
    %332 = vmatprep.subr.mxu0 0.0
    %333 = vmatpush1.msra.mxu0 %v295
    %334 = vmatprep.subr.mxu0 0.0
    %335 = vmatpush1.msra.mxu0 %v296
    %336 = vmatprep.subr.mxu0 0.0
    %337 = vmatpush1.msra.mxu0 0.0
    %338 = vmatprep.subr.mxu0 0.0
    %339 = vmatpush1.msra.mxu0 0.0
    %340 = vmatprep.subr.mxu0 0.0
    %341 = vmatpush1.msra.mxu0 0.0
    %342 = vmatprep.subr.mxu0 0.0
    %343 = vmatpush1.msra.mxu0 0.0
    %344 = vmatprep.subr.mxu0 0.0
    %345 = vmatpush1.msra.mxu0 0.0
    %346 = vmatprep.subr.mxu0 0.0
    %347 = vmatpush1.msra.mxu0 0.0
    %348 = vmatprep.subr.mxu0 0.0
    %349 = vmatpush1.msra.mxu0 0.0
    %350 = vmatprep.subr.mxu0 0.0
    %351 = vmatpush1.msra.mxu0 0.0
    %352 = vmatprep.subr.mxu0 0.0
    %353 = vmatpush1.msra.mxu0 0.0
    %354 = vmatprep.subr.mxu0 0.0
    %355 = vmatpush1.msra.mxu0 0.0
    %356 = vmatprep.subr.mxu0 0.0
    %357 = vmatpush1.msra.mxu0 0.0
    %358 = vmatprep.subr.mxu0 0.0
    %359 = vmatpush1.msra.mxu0 0.0
    %360 = vmatprep.subr.mxu0 0.0
    %361 = vmatpush1.msra.mxu0 0.0
    %362 = vmatprep.subr.mxu0 0.0
    %363 = vmatpush1.msra.mxu0 0.0
    %364 = vmatprep.subr.mxu0 0.0
    %365 = vmatpush1.msra.mxu0 0.0
    %366 = vmatprep.subr.mxu0 0.0
    %367 = vmatpush1.msra.mxu0 0.0
    %368 = vmatprep.mubr.f32.mxu0 0.0
    %369 = vmatmul.mubr.f32.gmra.mrb[0].mxu0 %v280
    %v370 = vpop.f32.mrb[0].mxu0
    %v371 = vadd.f32 %v302, %v370
    %v372 = vpop.f32.mrb[0].mxu0
    %373 = vdwg.mxu0
    %v374 = vmax.f32 %v371, 0.0
    %v375 = vld [vmem:[%s9] sm:$0xff]
    %v376 = vld [vmem:[%s9 + $0x8] sm:$0xff]
    %v377 = vld [vmem:[%s9 + $0x10] sm:$0xff]
    %v378 = vld [vmem:[%s9 + $0x18] sm:$0xff]
    %v379 = vld [vmem:[%s9 + $0x20] sm:$0xff]
    %v380 = vld [vmem:[%s9 + $0x28] sm:$0xff]
    %v381 = vld [vmem:[%s9 + $0x30] sm:$0xff]
    %v382 = vld [vmem:[%s9 + $0x38] sm:$0xff]
    %v383 = vld [vmem:[%s10] sm:$0x1]
    %v385 = vlaneseq
    %v386 = vshrl.u32 %v385, 7
    %v387 = vsub.s32 0, %v386
    %v388 = vrot.slane %v383, %v387
    %vm390 = vcmask 523264
    %v392 = vsel %vm390, %v374, 0
    %394 = vmatprep.subr.mxu0 0.0
    %395 = vmatpush1.msra.mxu0 %v375
    %396 = vmatprep.subr.mxu0 0.0
    %397 = vmatpush1.msra.mxu0 %v376
    %398 = vmatprep.subr.mxu0 0.0
    %399 = vmatpush1.msra.mxu0 %v377
    %400 = vmatprep.subr.mxu0 0.0
    %401 = vmatpush1.msra.mxu0 %v378
    %402 = vmatprep.subr.mxu0 0.0
    %403 = vmatpush1.msra.mxu0 %v379
    %404 = vmatprep.subr.mxu0 0.0
    %405 = vmatpush1.msra.mxu0 %v380
    %406 = vmatprep.subr.mxu0 0.0
    %407 = vmatpush1.msra.mxu0 %v381
    %408 = vmatprep.subr.mxu0 0.0
    %409 = vmatpush1.msra.mxu0 %v382
    %410 = vmatprep.subr.mxu0 0.0
    %411 = vmatpush1.msra.mxu0 0.0
    %412 = vmatprep.subr.mxu0 0.0
    %413 = vmatpush1.msra.mxu0 0.0
    %414 = vmatprep.subr.mxu0 0.0
    %415 = vmatpush1.msra.mxu0 0.0
    %416 = vmatprep.subr.mxu0 0.0
    %417 = vmatpush1.msra.mxu0 0.0
    %418 = vmatprep.subr.mxu0 0.0
    %419 = vmatpush1.msra.mxu0 0.0
    %420 = vmatprep.subr.mxu0 0.0
    %421 = vmatpush1.msra.mxu0 0.0
    %422 = vmatprep.subr.mxu0 0.0
    %423 = vmatpush1.msra.mxu0 0.0
    %424 = vmatprep.subr.mxu0 0.0
    %425 = vmatpush1.msra.mxu0 0.0
    %426 = vmatprep.subr.mxu0 0.0
    %427 = vmatpush1.msra.mxu0 0.0
    %428 = vmatprep.subr.mxu0 0.0
    %429 = vmatpush1.msra.mxu0 0.0
    %430 = vmatprep.subr.mxu0 0.0
    %431 = vmatpush1.msra.mxu0 0.0
    %432 = vmatprep.subr.mxu0 0.0
    %433 = vmatpush1.msra.mxu0 0.0
    %434 = vmatprep.subr.mxu0 0.0
    %435 = vmatpush1.msra.mxu0 0.0
    %436 = vmatprep.subr.mxu0 0.0
    %437 = vmatpush1.msra.mxu0 0.0
    %438 = vmatprep.subr.mxu0 0.0
    %439 = vmatpush1.msra.mxu0 0.0
    %440 = vmatprep.subr.mxu0 0.0
    %441 = vmatpush1.msra.mxu0 0.0
    %442 = vmatprep.subr.mxu0 0.0
    %443 = vmatpush1.msra.mxu0 0.0
    %444 = vmatprep.subr.mxu0 0.0
    %445 = vmatpush1.msra.mxu0 0.0
    %446 = vmatprep.subr.mxu0 0.0
    %447 = vmatpush1.msra.mxu0 0.0
    %448 = vmatprep.subr.mxu0 0.0
    %449 = vmatpush1.msra.mxu0 0.0
    %450 = vmatprep.subr.mxu0 0.0
    %451 = vmatpush1.msra.mxu0 0.0
    %452 = vmatprep.subr.mxu0 0.0
    %453 = vmatpush1.msra.mxu0 0.0
    %454 = vmatprep.subr.mxu0 0.0
    %455 = vmatpush1.msra.mxu0 0.0
    %456 = vmatprep.subr.mxu0 0.0
    %457 = vmatpush1.msra.mxu0 0.0
    %458 = vmatprep.mubr.f32.mxu0 0.0
    %459 = vmatmul.mubr.f32.gmra.mrb[0].mxu0 %v392
    %v460 = vpop.f32.mrb[0].mxu0
    %v461 = vadd.f32 %v388, %v460
    %v462 = vpop.f32.mrb[0].mxu0
    %463 = vdwg.mxu0
    %vm464 = vcmask 64512
    %465 = vst.msk [vmem:[#allocation2] sm:$0xff] %vm464, %v461
    // Predicated region
    $region46: #{hierarchical_gating_classifier.1} parent=1 // pred_check
      _
    $region47: #{hierarchical_gating_classifier.1} parent=1 // pred_check_branch
      %467 = sbr.rel (0) target = $region49
    $region48: #{hierarchical_gating_classifier.1} parent=1 // pred_region
      %s469 = ssub.s32 128, 128
      %470 = vsyncadd [#allocation3], %s469
      %s472 = sshll.u32 [#allocation2], 4
      %s473 = int_to_ptr.vmem [resolvable:$true] %s472
      %475 = dma.vmem_to_hbm [thread:$0]  %s473, 128, %s11, [#allocation3]
    $region49: #{hierarchical_gating_classifier.1} parent=1 // pred_fallthru
      _
    // Predicated region
    $region50: #{hierarchical_gating_classifier.1} parent=1 // pred_check
      _
    $region51: #{hierarchical_gating_classifier.1} parent=1 // pred_check_branch
      %477 = sbr.rel (0) target = $region53
    $region52: #{hierarchical_gating_classifier.1} parent=1 // pred_region
      %478 = dma.done [#allocation3], 128
    $region53: #{hierarchical_gating_classifier.1} parent=1 // pred_fallthru
      _
    %479 = vsyncpa [#allocation3], 1

</llo_original>
